<compile_context>
chip_gen: v7x
topology: tpu7x:2x2x1
jax: 0.10.0
libtpu: 0.0.40
codegen_flags: <defaults>
</compile_context>

<pallas_src>
import functools

import numpy as np

import jax
import jax.numpy as jnp
from jax.experimental import pallas as pl
from jax.experimental.pallas import tpu as pltpu


# ----------------------------- Pallas kernel --------------------------------
def _partial_conv_kernel(img_ref, w_ref, b_ref, sel_ref,
                         xout_ref, mout_ref, slab_ref,
                         *, c, kh, kw, wq, p_cols, oc):
    """Fused partial conv for one batch image (one grid step).

    img_ref  : (1, 2, C, L)        padded+flattened x / mask (channel-major)
    w_ref    : (2*OC, 2*C*KH*KW)   block-diag [conv ; mask_conv], tap-major
    b_ref    : (2*OC, 1)           [conv_b ; mask_b]
    sel_ref  : (P, OH*OW)          constant 0/1 valid-column selection
    xout_ref : (1, OC, OH*OW)      conv(x * mask) + bias            (flat NCHW)
    mout_ref : (1, OC, OH*OW)      clamp(mask_conv(mask) + bias,0,1) (flat NCHW)
    slab_ref : (2*C*KH*KW, P)      VMEM im2col scratch
    """
    x_img = img_ref[0, 0]            # (C, L)
    m_img = img_ref[0, 1]            # (C, L)
    xm = x_img * m_img               # fused x * mask (VPU, stays on-chip)

    # Build the im2col slab with static lane-shifted slices of the flattened
    # padded image: tap (i, j) of dense top-left position p lives at flat
    # index p + i*Wq + j.  No per-tap reshapes / gathers.
    for i in range(kh):
        for j in range(kw):
            t = i * kw + j
            d = i * wq + j
            slab_ref[pl.ds(2 * c * t, c), :] = xm[:, d:d + p_cols]
            slab_ref[pl.ds(2 * c * t + c, c), :] = m_img[:, d:d + p_cols]

    # One MXU contraction for both convolutions (block-diagonal weight), then
    # a 0/1 selection matmul that compacts the row-pitch / stride garbage
    # columns into a lane-dense (2*OC, OH*OW) result.
    acc = jnp.dot(w_ref[...], slab_ref[...],
                  preferred_element_type=jnp.float32)       # (2*OC, P)
    out = jnp.dot(acc, sel_ref[...],
                  preferred_element_type=jnp.float32)       # (2*OC, OH*OW)
    out = out + b_ref[...]

    xout_ref[0] = out[:oc]
    mout_ref[0] = jnp.clip(out[oc:], 0.0, 1.0)


# ------------------------------- glue (JAX) ---------------------------------
@functools.partial(jax.jit, static_argnames=("kernel_size", "stride", "padding"))
def partial_conv(x, mask, conv_w, conv_b, mask_w, mask_b,
                 *, kernel_size, stride, padding=1):
    """PartialConv.forward; returns (x_out, out_mask), both NCHW like PyTorch."""
    B, C, H, W = x.shape
    OC = conv_w.shape[0]
    KH = KW = kernel_size
    s = stride
    Hp, Wp = H + 2 * padding, W + 2 * padding
    OH = (Hp - KH) // s + 1
    OW = (Wp - KW) // s + 1
    M = OH * OW
    Wq = -(-Wp // s) * s            # row pitch, rounded up to a multiple of s
    Hq = Hp + s                     # extra zero rows so every tap read is in-range
    L = Hq * Wq
    P = OH * s * Wq                 # dense top-left-position columns in the slab
    K2 = 2 * C * KH * KW

    # ---- stacked, spatially zero-padded, flattened inputs: (B, 2, C, L) ----
    imgs = jnp.stack([x, mask], axis=1)                       # (B, 2, C, H, W)
    imgs = jnp.pad(imgs, ((0, 0), (0, 0), (0, 0),
                          (padding, padding + (Hq - Hp)),
                          (padding, padding + (Wq - Wp))))
    imgs = imgs.reshape(B, 2, C, L)                           # free reshape

    # ---- block-diagonal fused weight (2*OC, K2), tap-major [x | mask] ----
    def tap_major(w):   # (OC, C, KH, KW) -> (OC, KH*KW, C)
        return jnp.transpose(w, (0, 2, 3, 1)).reshape(OC, KH * KW, C)

    wx, wm = tap_major(conv_w), tap_major(mask_w)
    zeros = jnp.zeros_like(wx)
    w_comb = jnp.concatenate(
        [jnp.concatenate([wx, zeros], axis=2),
         jnp.concatenate([zeros, wm], axis=2)], axis=0).reshape(2 * OC, K2)
    b_comb = jnp.concatenate([conv_b, mask_b]).reshape(2 * OC, 1)

    # ---- constant 0/1 selection: dense position -> valid output column ----
    sel_np = np.zeros((P, M), np.float32)
    oh_idx, ow_idx = np.meshgrid(np.arange(OH), np.arange(OW), indexing="ij")
    src = (oh_idx * s * Wq + ow_idx * s).reshape(-1)
    sel_np[src, np.arange(M)] = 1.0
    sel = jnp.asarray(sel_np)

    kernel = functools.partial(_partial_conv_kernel, c=C, kh=KH, kw=KW,
                               wq=Wq, p_cols=P, oc=OC)

    cost = pl.CostEstimate(
        flops=2 * 2 * B * OH * OW * KH * KW * C * OC,
        transcendentals=0,
        bytes_accessed=4 * (imgs.size + w_comb.size + b_comb.size
                            + sel.size + 2 * B * OC * M))

    x_out, m_out = pl.pallas_call(
        kernel,
        out_shape=(jax.ShapeDtypeStruct((B, OC, M), jnp.float32),
                   jax.ShapeDtypeStruct((B, OC, M), jnp.float32)),
        grid_spec=pltpu.PrefetchScalarGridSpec(
            num_scalar_prefetch=0,
            grid=(B,),
            in_specs=[
                pl.BlockSpec((1, 2, C, L), lambda b: (b, 0, 0, 0)),
                # grid-invariant -> stay VMEM-resident across the batch grid
                pl.BlockSpec((2 * OC, K2), lambda b: (0, 0)),
                pl.BlockSpec((2 * OC, 1), lambda b: (0, 0)),
                pl.BlockSpec((P, M), lambda b: (0, 0)),
            ],
            out_specs=[pl.BlockSpec((1, OC, M), lambda b: (b, 0, 0)),
                       pl.BlockSpec((1, OC, M), lambda b: (b, 0, 0))],
            scratch_shapes=[pltpu.VMEM((K2, P), jnp.float32)],
        ),
        compiler_params=pltpu.CompilerParams(
            dimension_semantics=("parallel",),
            vmem_limit_bytes=32 * 1024 * 1024),
        cost_estimate=cost,
    )(imgs, w_comb, b_comb, sel)

    # (B, OC, OH*OW) -> NCHW (B, OC, OH, OW): pure metadata reshape.
    return (x_out.reshape(B, OC, OH, OW), m_out.reshape(B, OC, OH, OW))


# ------------------------------ reference -----------------------------------
def _reference(x, mask, conv_w, conv_b, mask_w, mask_b,
               kernel_size, stride, padding):
    dn = jax.lax.conv_dimension_numbers(x.shape, conv_w.shape,
                                        ("NCHW", "OIHW", "NCHW"))
    conv = lambda inp, w: jax.lax.conv_general_dilated(
        inp, w, (stride, stride), [(padding, padding), (padding, padding)],
        dimension_numbers=dn)
    out_mask = jnp.clip(conv(mask, mask_w) + mask_b.reshape(1, -1, 1, 1),
                        0.0, 1.0)
    x_out = conv(x * mask, conv_w) + conv_b.reshape(1, -1, 1, 1)
    return x_out, out_mask


# -------------------------------- driver -------------------------------------
if __name__ == "__main__":
    def run_case(key, kernel_size, stride, padding,
                 B=2, C_IN=4, C_OUT=8, H=16, W=16):
        k1, k2, k3, k4, k5, k6 = jax.random.split(key, 6)
        fan_in = C_IN * kernel_size * kernel_size
        bound = 1.0 / (fan_in ** 0.5)
        conv_w = jax.random.uniform(k1, (C_OUT, C_IN, kernel_size, kernel_size),
                                    jnp.float32, -bound, bound)
        conv_b = jax.random.uniform(k2, (C_OUT,), jnp.float32, -bound, bound)
        mask_w = jax.random.uniform(k3, (C_OUT, C_IN, kernel_size, kernel_size),
                                    jnp.float32, -bound, bound)
        mask_b = jax.random.uniform(k4, (C_OUT,), jnp.float32, -bound, bound)
        x = jax.random.normal(k5, (B, C_IN, H, W), jnp.float32)
        mask = (jax.random.uniform(k6, (B, C_IN, H, W)) > 0.3).astype(jnp.float32)

        x_out, m_out = partial_conv(x, mask, conv_w, conv_b, mask_w, mask_b,
                                    kernel_size=kernel_size, stride=stride,
                                    padding=padding)
        jax.block_until_ready((x_out, m_out))

        x_ref, m_ref = _reference(x, mask, conv_w, conv_b, mask_w, mask_b,
                                  kernel_size, stride, padding)
        assert x_out.shape == x_ref.shape and m_out.shape == m_ref.shape
        assert jnp.allclose(x_out, x_ref, atol=1e-4, rtol=1e-4), \
            f"x mismatch (ks={kernel_size}, stride={stride})"
        assert jnp.allclose(m_out, m_ref, atol=1e-4, rtol=1e-4), \
            f"mask mismatch (ks={kernel_size}, stride={stride})"

    key = jax.random.PRNGKey(0)
    k_a, k_b, k_c = jax.random.split(key, 3)
    run_case(k_a, kernel_size=3, stride=1, padding=1)   # main config
    run_case(k_b, kernel_size=3, stride=2, padding=1)   # strided path
    run_case(k_c, kernel_size=4, stride=2, padding=1)   # even-kernel path

    print("KERNEL_OK")
</pallas_src>

<mosaic_0001>
module attributes {stable_mosaic.version = 11 : i64} {
  func.func @_partial_conv_kernel(%arg0: i32, %arg1: memref<1x2x4x342xf32, #tpu.memory_space<vmem>>, %arg2: memref<16x72xf32, #tpu.memory_space<vmem>>, %arg3: memref<16x1xf32, #tpu.memory_space<vmem>>, %arg4: memref<288x256xf32, #tpu.memory_space<vmem>>, %arg5: memref<1x8x256xf32, #tpu.memory_space<vmem>>, %arg6: memref<1x8x256xf32, #tpu.memory_space<vmem>>, %arg7: memref<72x288xf32, #tpu.memory_space<vmem>>) attributes {dimension_semantics = [#tpu.dimension_semantics<parallel>], iteration_bounds = array<i64: 2>, scalar_prefetch = 0 : i64, scratch_operands = 1 : i64, tpu.core_type = #tpu.core_type<tc>, window_params = [{transform_indices = @transform_0, window_bounds = array<i64: 1, 2, 4, 342>}, {pipeline_mode = #tpu.pipeline_mode<synchronous>, transform_indices = @transform_1, window_bounds = array<i64: 16, 72>}, {pipeline_mode = #tpu.pipeline_mode<synchronous>, transform_indices = @transform_2, window_bounds = array<i64: 16, 1>}, {pipeline_mode = #tpu.pipeline_mode<synchronous>, transform_indices = @transform_3, window_bounds = array<i64: 288, 256>}, {transform_indices = @transform_4, window_bounds = array<i64: 1, 8, 256>}, {transform_indices = @transform_5, window_bounds = array<i64: 1, 8, 256>}]} {
    %c0 = arith.constant 0 : index
    %c0_0 = arith.constant 0 : index
    %c0_1 = arith.constant 0 : index
    %c0_2 = arith.constant 0 : index
    %0 = vector.load %arg1[%c0, %c0_0, %c0_1, %c0_2] : memref<1x2x4x342xf32, #tpu.memory_space<vmem>>, vector<1x1x4x342xf32>
    %1 = vector.shape_cast %0 : vector<1x1x4x342xf32> to vector<4x342xf32>
    %c0_3 = arith.constant 0 : index
    %c1 = arith.constant 1 : index
    %c0_4 = arith.constant 0 : index
    %c0_5 = arith.constant 0 : index
    %2 = vector.load %arg1[%c0_3, %c1, %c0_4, %c0_5] : memref<1x2x4x342xf32, #tpu.memory_space<vmem>>, vector<1x1x4x342xf32>
    %3 = vector.shape_cast %2 : vector<1x1x4x342xf32> to vector<4x342xf32>
    %4 = arith.mulf %1, %3 : vector<4x342xf32>
    %5 = vector.extract_strided_slice %4 {offsets = [0, 0], sizes = [4, 288], strides = [1, 1]} : vector<4x342xf32> to vector<4x288xf32>
    %c0_6 = arith.constant 0 : index
    %c0_7 = arith.constant 0 : index
    %6 = vector.load %arg7[%c0_6, %c0_7] : memref<72x288xf32, #tpu.memory_space<vmem>>, vector<4x288xf32>
    tpu.vector_store %arg7[%c0_6, %c0_7], %5 {strides = array<i32>} : memref<72x288xf32, #tpu.memory_space<vmem>>, vector<4x288xf32>,
    %7 = vector.extract_strided_slice %3 {offsets = [0, 0], sizes = [4, 288], strides = [1, 1]} : vector<4x342xf32> to vector<4x288xf32>
    %c4 = arith.constant 4 : index
    %c0_8 = arith.constant 0 : index
    %8 = vector.load %arg7[%c4, %c0_8] : memref<72x288xf32, #tpu.memory_space<vmem>>, vector<4x288xf32>
    tpu.vector_store %arg7[%c4, %c0_8], %7 {strides = array<i32>} : memref<72x288xf32, #tpu.memory_space<vmem>>, vector<4x288xf32>,
    %9 = vector.extract_strided_slice %4 {offsets = [0, 1], sizes = [4, 288], strides = [1, 1]} : vector<4x342xf32> to vector<4x288xf32>
    %c8 = arith.constant 8 : index
    %c0_9 = arith.constant 0 : index
    %10 = vector.load %arg7[%c8, %c0_9] : memref<72x288xf32, #tpu.memory_space<vmem>>, vector<4x288xf32>
    tpu.vector_store %arg7[%c8, %c0_9], %9 {strides = array<i32>} : memref<72x288xf32, #tpu.memory_space<vmem>>, vector<4x288xf32>,
    %11 = vector.extract_strided_slice %3 {offsets = [0, 1], sizes = [4, 288], strides = [1, 1]} : vector<4x342xf32> to vector<4x288xf32>
    %c12 = arith.constant 12 : index
    %c0_10 = arith.constant 0 : index
    %12 = vector.load %arg7[%c12, %c0_10] : memref<72x288xf32, #tpu.memory_space<vmem>>, vector<4x288xf32>
    tpu.vector_store %arg7[%c12, %c0_10], %11 {strides = array<i32>} : memref<72x288xf32, #tpu.memory_space<vmem>>, vector<4x288xf32>,
    %13 = vector.extract_strided_slice %4 {offsets = [0, 2], sizes = [4, 288], strides = [1, 1]} : vector<4x342xf32> to vector<4x288xf32>
    %c16 = arith.constant 16 : index
    %c0_11 = arith.constant 0 : index
    %14 = vector.load %arg7[%c16, %c0_11] : memref<72x288xf32, #tpu.memory_space<vmem>>, vector<4x288xf32>
    tpu.vector_store %arg7[%c16, %c0_11], %13 {strides = array<i32>} : memref<72x288xf32, #tpu.memory_space<vmem>>, vector<4x288xf32>,
    %15 = vector.extract_strided_slice %3 {offsets = [0, 2], sizes = [4, 288], strides = [1, 1]} : vector<4x342xf32> to vector<4x288xf32>
    %c20 = arith.constant 20 : index
    %c0_12 = arith.constant 0 : index
    %16 = vector.load %arg7[%c20, %c0_12] : memref<72x288xf32, #tpu.memory_space<vmem>>, vector<4x288xf32>
    tpu.vector_store %arg7[%c20, %c0_12], %15 {strides = array<i32>} : memref<72x288xf32, #tpu.memory_space<vmem>>, vector<4x288xf32>,
    %17 = vector.extract_strided_slice %4 {offsets = [0, 18], sizes = [4, 288], strides = [1, 1]} : vector<4x342xf32> to vector<4x288xf32>
    %c24 = arith.constant 24 : index
    %c0_13 = arith.constant 0 : index
    %18 = vector.load %arg7[%c24, %c0_13] : memref<72x288xf32, #tpu.memory_space<vmem>>, vector<4x288xf32>
    tpu.vector_store %arg7[%c24, %c0_13], %17 {strides = array<i32>} : memref<72x288xf32, #tpu.memory_space<vmem>>, vector<4x288xf32>,
    %19 = vector.extract_strided_slice %3 {offsets = [0, 18], sizes = [4, 288], strides = [1, 1]} : vector<4x342xf32> to vector<4x288xf32>
    %c28 = arith.constant 28 : index
    %c0_14 = arith.constant 0 : index
    %20 = vector.load %arg7[%c28, %c0_14] : memref<72x288xf32, #tpu.memory_space<vmem>>, vector<4x288xf32>
    tpu.vector_store %arg7[%c28, %c0_14], %19 {strides = array<i32>} : memref<72x288xf32, #tpu.memory_space<vmem>>, vector<4x288xf32>,
    %21 = vector.extract_strided_slice %4 {offsets = [0, 19], sizes = [4, 288], strides = [1, 1]} : vector<4x342xf32> to vector<4x288xf32>
    %c32 = arith.constant 32 : index
    %c0_15 = arith.constant 0 : index
    %22 = vector.load %arg7[%c32, %c0_15] : memref<72x288xf32, #tpu.memory_space<vmem>>, vector<4x288xf32>
    tpu.vector_store %arg7[%c32, %c0_15], %21 {strides = array<i32>} : memref<72x288xf32, #tpu.memory_space<vmem>>, vector<4x288xf32>,
    %23 = vector.extract_strided_slice %3 {offsets = [0, 19], sizes = [4, 288], strides = [1, 1]} : vector<4x342xf32> to vector<4x288xf32>
    %c36 = arith.constant 36 : index
    %c0_16 = arith.constant 0 : index
    %24 = vector.load %arg7[%c36, %c0_16] : memref<72x288xf32, #tpu.memory_space<vmem>>, vector<4x288xf32>
    tpu.vector_store %arg7[%c36, %c0_16], %23 {strides = array<i32>} : memref<72x288xf32, #tpu.memory_space<vmem>>, vector<4x288xf32>,
    %25 = vector.extract_strided_slice %4 {offsets = [0, 20], sizes = [4, 288], strides = [1, 1]} : vector<4x342xf32> to vector<4x288xf32>
    %c40 = arith.constant 40 : index
    %c0_17 = arith.constant 0 : index
    %26 = vector.load %arg7[%c40, %c0_17] : memref<72x288xf32, #tpu.memory_space<vmem>>, vector<4x288xf32>
    tpu.vector_store %arg7[%c40, %c0_17], %25 {strides = array<i32>} : memref<72x288xf32, #tpu.memory_space<vmem>>, vector<4x288xf32>,
    %27 = vector.extract_strided_slice %3 {offsets = [0, 20], sizes = [4, 288], strides = [1, 1]} : vector<4x342xf32> to vector<4x288xf32>
    %c44 = arith.constant 44 : index
    %c0_18 = arith.constant 0 : index
    %28 = vector.load %arg7[%c44, %c0_18] : memref<72x288xf32, #tpu.memory_space<vmem>>, vector<4x288xf32>
    tpu.vector_store %arg7[%c44, %c0_18], %27 {strides = array<i32>} : memref<72x288xf32, #tpu.memory_space<vmem>>, vector<4x288xf32>,
    %29 = vector.extract_strided_slice %4 {offsets = [0, 36], sizes = [4, 288], strides = [1, 1]} : vector<4x342xf32> to vector<4x288xf32>
    %c48 = arith.constant 48 : index
    %c0_19 = arith.constant 0 : index
    %30 = vector.load %arg7[%c48, %c0_19] : memref<72x288xf32, #tpu.memory_space<vmem>>, vector<4x288xf32>
    tpu.vector_store %arg7[%c48, %c0_19], %29 {strides = array<i32>} : memref<72x288xf32, #tpu.memory_space<vmem>>, vector<4x288xf32>,
    %31 = vector.extract_strided_slice %3 {offsets = [0, 36], sizes = [4, 288], strides = [1, 1]} : vector<4x342xf32> to vector<4x288xf32>
    %c52 = arith.constant 52 : index
    %c0_20 = arith.constant 0 : index
    %32 = vector.load %arg7[%c52, %c0_20] : memref<72x288xf32, #tpu.memory_space<vmem>>, vector<4x288xf32>
    tpu.vector_store %arg7[%c52, %c0_20], %31 {strides = array<i32>} : memref<72x288xf32, #tpu.memory_space<vmem>>, vector<4x288xf32>,
    %33 = vector.extract_strided_slice %4 {offsets = [0, 37], sizes = [4, 288], strides = [1, 1]} : vector<4x342xf32> to vector<4x288xf32>
    %c56 = arith.constant 56 : index
    %c0_21 = arith.constant 0 : index
    %34 = vector.load %arg7[%c56, %c0_21] : memref<72x288xf32, #tpu.memory_space<vmem>>, vector<4x288xf32>
    tpu.vector_store %arg7[%c56, %c0_21], %33 {strides = array<i32>} : memref<72x288xf32, #tpu.memory_space<vmem>>, vector<4x288xf32>,
    %35 = vector.extract_strided_slice %3 {offsets = [0, 37], sizes = [4, 288], strides = [1, 1]} : vector<4x342xf32> to vector<4x288xf32>
    %c60 = arith.constant 60 : index
    %c0_22 = arith.constant 0 : index
    %36 = vector.load %arg7[%c60, %c0_22] : memref<72x288xf32, #tpu.memory_space<vmem>>, vector<4x288xf32>
    tpu.vector_store %arg7[%c60, %c0_22], %35 {strides = array<i32>} : memref<72x288xf32, #tpu.memory_space<vmem>>, vector<4x288xf32>,
    %37 = vector.extract_strided_slice %4 {offsets = [0, 38], sizes = [4, 288], strides = [1, 1]} : vector<4x342xf32> to vector<4x288xf32>
    %c64 = arith.constant 64 : index
    %c0_23 = arith.constant 0 : index
    %38 = vector.load %arg7[%c64, %c0_23] : memref<72x288xf32, #tpu.memory_space<vmem>>, vector<4x288xf32>
    tpu.vector_store %arg7[%c64, %c0_23], %37 {strides = array<i32>} : memref<72x288xf32, #tpu.memory_space<vmem>>, vector<4x288xf32>,
    %39 = vector.extract_strided_slice %3 {offsets = [0, 38], sizes = [4, 288], strides = [1, 1]} : vector<4x342xf32> to vector<4x288xf32>
    %c68 = arith.constant 68 : index
    %c0_24 = arith.constant 0 : index
    %40 = vector.load %arg7[%c68, %c0_24] : memref<72x288xf32, #tpu.memory_space<vmem>>, vector<4x288xf32>
    tpu.vector_store %arg7[%c68, %c0_24], %39 {strides = array<i32>} : memref<72x288xf32, #tpu.memory_space<vmem>>, vector<4x288xf32>,
    %c0_25 = arith.constant 0 : index
    %c0_26 = arith.constant 0 : index
    %41 = vector.load %arg2[%c0_25, %c0_26] : memref<16x72xf32, #tpu.memory_space<vmem>>, vector<16x72xf32>
    %c0_27 = arith.constant 0 : index
    %c0_28 = arith.constant 0 : index
    %42 = vector.load %arg7[%c0_27, %c0_28] : memref<72x288xf32, #tpu.memory_space<vmem>>, vector<72x288xf32>
    %cst = arith.constant dense<0.000000e+00> : vector<16x288xf32>
    %43 = tpu.matmul %41, %42, %cst {dimension_numbers = #tpu.dot_dimension_numbers<[1], [0], [0], [1], [0, 0, 1, 1], [], []>} : vector<16x72xf32>, vector<72x288xf32>, vector<16x288xf32> -> vector<16x288xf32>
    %c0_29 = arith.constant 0 : index
    %c0_30 = arith.constant 0 : index
    %44 = vector.load %arg4[%c0_29, %c0_30] : memref<288x256xf32, #tpu.memory_space<vmem>>, vector<288x256xf32>
    %cst_31 = arith.constant dense<0.000000e+00> : vector<16x256xf32>
    %45 = tpu.matmul %43, %44, %cst_31 {dimension_numbers = #tpu.dot_dimension_numbers<[1], [0], [0], [1], [0, 0, 1, 1], [], []>} : vector<16x288xf32>, vector<288x256xf32>, vector<16x256xf32> -> vector<16x256xf32>
    %c0_32 = arith.constant 0 : index
    %c0_33 = arith.constant 0 : index
    %46 = vector.load %arg3[%c0_32, %c0_33] : memref<16x1xf32, #tpu.memory_space<vmem>>, vector<16x1xf32>
    %47 = vector.broadcast %46 : vector<16x1xf32> to vector<16x256xf32>
    %48 = arith.addf %45, %47 : vector<16x256xf32>
    %49 = vector.extract_strided_slice %48 {offsets = [0, 0], sizes = [8, 256], strides = [1, 1]} : vector<16x256xf32> to vector<8x256xf32>
    %c0_34 = arith.constant 0 : index
    %c0_35 = arith.constant 0 : index
    %c0_36 = arith.constant 0 : index
    %50 = vector.load %arg5[%c0_34, %c0_35, %c0_36] : memref<1x8x256xf32, #tpu.memory_space<vmem>>, vector<1x8x256xf32>
    %51 = vector.shape_cast %50 : vector<1x8x256xf32> to vector<8x256xf32>
    %52 = vector.shape_cast %49 : vector<8x256xf32> to vector<1x8x256xf32>
    tpu.vector_store %arg5[%c0_34, %c0_35, %c0_36], %52 {strides = array<i32>} : memref<1x8x256xf32, #tpu.memory_space<vmem>>, vector<1x8x256xf32>,
    %53 = vector.extract_strided_slice %48 {offsets = [8, 0], sizes = [8, 256], strides = [1, 1]} : vector<16x256xf32> to vector<8x256xf32>
    %cst_37 = arith.constant 0.000000e+00 : f32
    %cst_38 = arith.constant 1.000000e+00 : f32
    %54 = vector.broadcast %cst_37 : f32 to vector<8x256xf32>
    %55 = arith.maximumf %54, %53 : vector<8x256xf32>
    %56 = vector.broadcast %cst_38 : f32 to vector<8x256xf32>
    %57 = arith.minimumf %56, %55 : vector<8x256xf32>
    %c0_39 = arith.constant 0 : index
    %c0_40 = arith.constant 0 : index
    %c0_41 = arith.constant 0 : index
    %58 = vector.load %arg6[%c0_39, %c0_40, %c0_41] : memref<1x8x256xf32, #tpu.memory_space<vmem>>, vector<1x8x256xf32>
    %59 = vector.shape_cast %58 : vector<1x8x256xf32> to vector<8x256xf32>
    %60 = vector.shape_cast %57 : vector<8x256xf32> to vector<1x8x256xf32>
    tpu.vector_store %arg6[%c0_39, %c0_40, %c0_41], %60 {strides = array<i32>} : memref<1x8x256xf32, #tpu.memory_space<vmem>>, vector<1x8x256xf32>,
    return
  }
  func.func @transform_0(%arg0: i32) -> (i32, i32, i32, i32) {
    %c0_i32 = arith.constant 0 : i32
    %c0_i32_0 = arith.constant 0 : i32
    %c0_i32_1 = arith.constant 0 : i32
    %c0_i32_2 = arith.constant 0 : i32
    return %arg0, %c0_i32, %c0_i32_0, %c0_i32_1 : i32, i32, i32, i32
  }
  func.func @transform_1(%arg0: i32) -> (i32, i32) {
    %c0_i32 = arith.constant 0 : i32
    %c0_i32_0 = arith.constant 0 : i32
    %c0_i32_1 = arith.constant 0 : i32
    return %c0_i32, %c0_i32_0 : i32, i32
  }
  func.func @transform_2(%arg0: i32) -> (i32, i32) {
    %c0_i32 = arith.constant 0 : i32
    %c0_i32_0 = arith.constant 0 : i32
    %c0_i32_1 = arith.constant 0 : i32
    return %c0_i32, %c0_i32_0 : i32, i32
  }
  func.func @transform_3(%arg0: i32) -> (i32, i32) {
    %c0_i32 = arith.constant 0 : i32
    %c0_i32_0 = arith.constant 0 : i32
    %c0_i32_1 = arith.constant 0 : i32
    return %c0_i32, %c0_i32_0 : i32, i32
  }
  func.func @transform_4(%arg0: i32) -> (i32, i32, i32) {
    %c0_i32 = arith.constant 0 : i32
    %c0_i32_0 = arith.constant 0 : i32
    %c0_i32_1 = arith.constant 0 : i32
    return %arg0, %c0_i32, %c0_i32_0 : i32, i32, i32
  }
  func.func @transform_5(%arg0: i32) -> (i32, i32, i32) {
    %c0_i32 = arith.constant 0 : i32
    %c0_i32_0 = arith.constant 0 : i32
    %c0_i32_1 = arith.constant 0 : i32
    return %arg0, %c0_i32, %c0_i32_0 : i32, i32, i32
  }
}

</mosaic_0001>

<llo_original>
// kernel: partial_conv.1
$region0: #{partial_conv.1}
  #allocation0 [shape = 'u32[]', space=smem, size = 0x4, offset = 0x4, fixed_abs, tag = 'smem constant byte address 0x4 - core index']
  #allocation1 [shape = 'u32[144,128]{1,0:T(1,128)}', space=vmem, size = 0x12000, scoped, tag = 'internal scratch']
  #allocation2 [shape = 'f32[72,288]{1,0:T(8,128)}', space=vmem, size = 0x1b000, scoped, tag = 'scratch operand']
  %s0 = inlined_call_operand.vmem [shape: f32[2,2,4,342], index: 0, kind: input, shape index: {}]
  %s1 = inlined_call_operand.vmem [shape: f32[16,72], index: 1, kind: input, shape index: {}]
  %s2 = inlined_call_operand.vmem [shape: f32[16,1], index: 2, kind: input, shape index: {}]
  %s3 = inlined_call_operand.vmem [shape: f32[288,256], index: 3, kind: input, shape index: {}]
  %s4 = inlined_call_operand.vmem [shape: f32[2,8,256], index: 4, kind: output, shape index: {0}]
  %s5 = inlined_call_operand.vmem [shape: f32[2,8,256], index: 5, kind: output, shape index: {1}]
  %6 = xla_tuple %s4, %s5
  %s7 = sld [smem:[#allocation0]]
  $region57: #{partial_conv.1} parent=0
    _
  %s9 = ssub.s32 1, %s7
  %s10 = scalar_select 0, %s9, %s7
  loop: start=0, step=1, limit=4
  $region2: #{partial_conv.1} parent=0 // loop_pre_header
    _
  $region3: #{partial_conv.1} parent=0 // loop_header
    %s12 = sphi 0, %s16
    %p13 = scmp.ge.s32.totalorder %s12, 4
    %s22 = sphi 0, %s24
    %s25 = sphi 0, %s22
    %s26 = sphi 0, %s25
    %s42 = sphi 0, %s26
    %s46 = sphi 0, %s46
    %s48 = sphi 0, %s46
    %s49 = sphi 0, %s48
    %s63 = sphi 0, %s49
    %s67 = sphi 0, %s67
    %s69 = sphi 0, %s67
    %s70 = sphi 0, %s69
    %s84 = sphi 0, %s70
    %s88 = sphi 0, %s88
    %s90 = sphi 0, %s88
    %s91 = sphi 0, %s90
    %s105 = sphi 0, %s91
    %s111 = sphi 0, %s113
    %s114 = sphi 0, %s111
    %s115 = sphi 0, %s114
    %s131 = sphi 0, %s115
    %s137 = sphi 0, %s139
    %s140 = sphi 0, %s137
    %s141 = sphi 0, %s140
    %s157 = sphi 0, %s141
  $region4: #{partial_conv.1} parent=0 // loop_header_branch
    %15 = sbr.rel (%p13) target = $region8
  $region5: #{partial_conv.1} parent=0 // loop_body
    %s17 = ssub.s32 %s12, 1
    %s18 = ssub.s32 %s12, 2
    %s19 = sadd.s32 %s12, 1
    %s20 = ssub.s32 %s12, %s19
    %p21 = scmp.eq.s32.totalorder %s20, 0
    %s23 = sadd.s32 %s22, 1
    %s24 = scalar_select %p21, %s22, %s23
    %p27 = pneg %p21
    %p28 = scmp.eq.s32.totalorder %s12, 1
    %p29 = por %p27, %p28
    %p30 = scmp.ne.s32.totalorder %s22, %s25
    %p31 = scmp.eq.s32.totalorder %s12, 0
    %p32 = por %p30, %p31
    %p33 = scmp.ne.s32.totalorder %s22, %s25
    %p34 = scmp.eq.s32.totalorder %s17, 1
    %p35 = por %p33, %p34
    %p36 = scmp.ne.s32.totalorder %s25, %s26
    %p37 = scmp.eq.s32.totalorder %s17, 0
    %p38 = por %p36, %p37
    %p39 = scmp.ne.s32.totalorder %s25, %s26
    %p40 = scmp.eq.s32.totalorder %s18, 1
    %p41 = por %p39, %p40
    %p43 = scmp.ne.s32.totalorder %s26, %s42
    %p44 = scmp.eq.s32.totalorder %s18, 0
    %p45 = por %p43, %p44
    %s47 = sadd.s32 %s46, 1
    %p50 = scmp.eq.s32.totalorder %s12, 1
    %p51 = scmp.ne.s32.totalorder %s46, %s48
    %p52 = scmp.eq.s32.totalorder %s12, 0
    %p53 = por %p51, %p52
    %p54 = scmp.ne.s32.totalorder %s46, %s48
    %p55 = scmp.eq.s32.totalorder %s17, 1
    %p56 = por %p54, %p55
    %p57 = scmp.ne.s32.totalorder %s48, %s49
    %p58 = scmp.eq.s32.totalorder %s17, 0
    %p59 = por %p57, %p58
    %p60 = scmp.ne.s32.totalorder %s48, %s49
    %p61 = scmp.eq.s32.totalorder %s18, 1
    %p62 = por %p60, %p61
    %p64 = scmp.ne.s32.totalorder %s49, %s63
    %p65 = scmp.eq.s32.totalorder %s18, 0
    %p66 = por %p64, %p65
    %s68 = sadd.s32 %s67, 1
    %p71 = scmp.eq.s32.totalorder %s12, 1
    %p72 = scmp.ne.s32.totalorder %s67, %s69
    %p73 = scmp.eq.s32.totalorder %s12, 0
    %p74 = por %p72, %p73
    %p75 = scmp.ne.s32.totalorder %s67, %s69
    %p76 = scmp.eq.s32.totalorder %s17, 1
    %p77 = por %p75, %p76
    %p78 = scmp.ne.s32.totalorder %s69, %s70
    %p79 = scmp.eq.s32.totalorder %s17, 0
    %p80 = por %p78, %p79
    %p81 = scmp.ne.s32.totalorder %s69, %s70
    %p82 = scmp.eq.s32.totalorder %s18, 1
    %p83 = por %p81, %p82
    %p85 = scmp.ne.s32.totalorder %s70, %s84
    %p86 = scmp.eq.s32.totalorder %s18, 0
    %p87 = por %p85, %p86
    %s89 = sadd.s32 %s88, 1
    %p92 = scmp.eq.s32.totalorder %s12, 1
    %p93 = scmp.ne.s32.totalorder %s88, %s90
    %p94 = scmp.eq.s32.totalorder %s12, 0
    %p95 = por %p93, %p94
    %p96 = scmp.ne.s32.totalorder %s88, %s90
    %p97 = scmp.eq.s32.totalorder %s17, 1
    %p98 = por %p96, %p97
    %p99 = scmp.ne.s32.totalorder %s90, %s91
    %p100 = scmp.eq.s32.totalorder %s17, 0
    %p101 = por %p99, %p100
    %p102 = scmp.ne.s32.totalorder %s90, %s91
    %p103 = scmp.eq.s32.totalorder %s18, 1
    %p104 = por %p102, %p103
    %p106 = scmp.ne.s32.totalorder %s91, %s105
    %p107 = scmp.eq.s32.totalorder %s18, 0
    %p108 = por %p106, %p107
    %s109 = ssub.s32 %s12, %s19
    %p110 = scmp.eq.s32.totalorder %s109, 0
    %s112 = sadd.s32 %s111, 1
    %s113 = scalar_select %p110, %s111, %s112
    %p116 = pneg %p110
    %p117 = scmp.eq.s32.totalorder %s12, 1
    %p118 = por %p116, %p117
    %p119 = scmp.ne.s32.totalorder %s111, %s114
    %p120 = scmp.eq.s32.totalorder %s12, 0
    %p121 = por %p119, %p120
    %p122 = scmp.ne.s32.totalorder %s111, %s114
    %p123 = scmp.eq.s32.totalorder %s17, 1
    %p124 = por %p122, %p123
    %p125 = scmp.ne.s32.totalorder %s114, %s115
    %p126 = scmp.eq.s32.totalorder %s17, 0
    %p127 = por %p125, %p126
    %p128 = scmp.ne.s32.totalorder %s114, %s115
    %p129 = scmp.eq.s32.totalorder %s18, 1
    %p130 = por %p128, %p129
    %p132 = scmp.ne.s32.totalorder %s115, %s131
    %p133 = scmp.eq.s32.totalorder %s18, 0
    %p134 = por %p132, %p133
    %s135 = ssub.s32 %s12, %s19
    %p136 = scmp.eq.s32.totalorder %s135, 0
    %s138 = sadd.s32 %s137, 1
    %s139 = scalar_select %p136, %s137, %s138
    %p142 = pneg %p136
    %p143 = scmp.eq.s32.totalorder %s12, 1
    %p144 = por %p142, %p143
    %p145 = scmp.ne.s32.totalorder %s137, %s140
    %p146 = scmp.eq.s32.totalorder %s12, 0
    %p147 = por %p145, %p146
    %p148 = scmp.ne.s32.totalorder %s137, %s140
    %p149 = scmp.eq.s32.totalorder %s17, 1
    %p150 = por %p148, %p149
    %p151 = scmp.ne.s32.totalorder %s140, %s141
    %p152 = scmp.eq.s32.totalorder %s17, 0
    %p153 = por %p151, %p152
    %p154 = scmp.ne.s32.totalorder %s140, %s141
    %p155 = scmp.eq.s32.totalorder %s18, 1
    %p156 = por %p154, %p155
    %p158 = scmp.ne.s32.totalorder %s141, %s157
    %p159 = scmp.eq.s32.totalorder %s18, 0
    %p160 = por %p158, %p159
    %p161 = scmp.le.s32.totalorder 1, %s12
    %p162 = scmp.lt.s32.totalorder %s12, 3
    %p163 = pnand %p161, %p162
    %p164 = pneg %p163
    // Predicated region
    $region9: #{partial_conv.1} parent=5 // pred_check
      _
    $region10: #{partial_conv.1} parent=5 // pred_check_branch
      %166 = sbr.rel (%p163) target = $region12
    $region11: #{partial_conv.1} parent=5 // pred_region
      %s167 = ssub.s32 %s12, 1
      // Predicated region
      $region13: #{partial_conv.1} parent=11 // pred_check
        %p168 = pneg %p59
      $region14: #{partial_conv.1} parent=11 // pred_check_branch
        %170 = sbr.rel (%p168) target = $region16
      $region15: #{partial_conv.1} parent=11 // pred_region
        _
      $region16: #{partial_conv.1} parent=11 // pred_fallthru
        _
      // Predicated region
      $region17: #{partial_conv.1} parent=11 // pred_check
        %p171 = pneg %p80
      $region18: #{partial_conv.1} parent=11 // pred_check_branch
        %173 = sbr.rel (%p171) target = $region20
      $region19: #{partial_conv.1} parent=11 // pred_region
        _
      $region20: #{partial_conv.1} parent=11 // pred_fallthru
        _
      // Predicated region
      $region21: #{partial_conv.1} parent=11 // pred_check
        %p174 = pneg %p101
      $region22: #{partial_conv.1} parent=11 // pred_check_branch
        %176 = sbr.rel (%p174) target = $region24
      $region23: #{partial_conv.1} parent=11 // pred_region
        _
      $region24: #{partial_conv.1} parent=11 // pred_fallthru
        _
    $region12: #{partial_conv.1} parent=5 // pred_fallthru
      _
    %p177 = scmp.lt.s32.totalorder %s12, 2
    // Predicated region
    $region25: #{partial_conv.1} parent=5 // pred_check
      %p178 = pneg %p177
    $region26: #{partial_conv.1} parent=5 // pred_check_branch
      %180 = sbr.rel (%p178) target = $region28
    $region27: #{partial_conv.1} parent=5 // pred_region
      // Predicated region
      $region29: #{partial_conv.1} parent=27 // pred_check
        %p181 = pneg %p32
      $region30: #{partial_conv.1} parent=27 // pred_check_branch
        %183 = sbr.rel (%p181) target = $region32
      $region31: #{partial_conv.1} parent=27 // pred_region
        %p184 = scmp.lt.s32.totalorder %s12, 1
        %s185 = scalar_select %p184, %s12, 1
        %s186 = smul.addr %s185, 6
        %s187 = smul.addr %s186, 4
        %s188 = scalar_lea.vmem %s0, %s187
      $region32: #{partial_conv.1} parent=27 // pred_fallthru
        _
    $region28: #{partial_conv.1} parent=5 // pred_fallthru
      _
    %p189 = scmp.le.s32.totalorder 1, %s12
    %p190 = scmp.lt.s32.totalorder %s12, 3
    %p191 = pnand %p189, %p190
    %p192 = pneg %p191
    // Predicated region
    $region33: #{partial_conv.1} parent=5 // pred_check
      _
    $region34: #{partial_conv.1} parent=5 // pred_check_branch
      %194 = sbr.rel (%p191) target = $region36
    $region35: #{partial_conv.1} parent=5 // pred_region
      %s195 = ssub.s32 %s12, 1
      %p196 = scmp.lt.s32.totalorder %s17, 1
      %s197 = scalar_select %p196, %s17, 1
      %s198 = smul.addr %s197, 6
      %s199 = smul.addr %s198, 4
      %s200 = scalar_lea.vmem %s0, %s199
      %p201 = pneg %p38
      %p202 = pneg %p35
      %p203 = pneg %p59
      %p204 = pneg %p56
      %p205 = pneg %p80
      %p206 = pneg %p77
      %p207 = pneg %p101
      %p208 = pneg %p98
      %p209 = pneg %p127
      %p210 = pneg %p124
      %p211 = scmp.lt.s32.totalorder %s17, 1
      %s212 = scalar_select %p211, %s17, 1
      %s213 = smul.addr %s212, 2
      %s214 = smul.addr %s213, 8
      %s215 = scalar_lea.vmem %s4, %s214
      %p216 = pneg %p153
      %p217 = pneg %p150
      %p218 = scmp.lt.s32.totalorder %s17, 1
      %s219 = scalar_select %p218, %s17, 1
      %s220 = smul.addr %s219, 2
      %s221 = smul.addr %s220, 8
      %s222 = scalar_lea.vmem %s5, %s221
      %p223 = scmp.lt.s32.totalorder %s17, 1
      %s224 = scalar_select %p223, %s17, 1
      %s225 = smul.addr %s224, 6
      %s226 = smul.addr %s225, 4
      %s227 = scalar_lea.vmem %s0, %s226
      %p228 = scmp.lt.s32.totalorder %s17, 1
      %s229 = scalar_select %p228, %s17, 1
      %s230 = smul.addr %s229, 2
      %s231 = smul.addr %s230, 8
      %s232 = scalar_lea.vmem %s4, %s231
      %p233 = scmp.lt.s32.totalorder %s17, 1
      %s234 = scalar_select %p233, %s17, 1
      %s235 = smul.addr %s234, 2
      %s236 = smul.addr %s235, 8
      %s237 = scalar_lea.vmem %s5, %s236
      %v238 = vld [vmem:[%s227] sm:$0xff]
      %v239 = vld [vmem:[%s227 + $0x8] sm:$0xf]
      %s240 = scalar_lea.vmem %s227, 12
      %v241 = vld [vmem:[%s240] sm:$0xff]
      %v242 = vld [vmem:[%s240 + $0x8] sm:$0xf]
      %v243 = vmul.f32 %v238, %v241
      %v244 = vmul.f32 %v239, %v242
      %v247 = vcombine.high %v243, %v243
      %249 = vst [vmem:[#allocation2] sm:$0xf] %v243
      %250 = vst [vmem:[#allocation2 + $0x8] sm:$0xf] %v247
      %vm251 = vcmask 257024
      %252 = vst.msk [vmem:[#allocation2 + $0x10] sm:$0xf] %vm251, %v244
      %v255 = vcombine.low %v241, %v241
      %v256 = vcombine.low %v242, %v242
      %259 = vst [vmem:[#allocation2] sm:$0xf0] %v255
      %260 = vst [vmem:[#allocation2 + $0x8] sm:$0xf0] %v241
      %vm261 = vcmask 261124
      %262 = vst.msk [vmem:[#allocation2 + $0x10] sm:$0xf0] %vm261, %v256
      %263 = vrot.lane.b32.xlu0 %v243, 127
      %v264 = vpop.permute.xlu0 %263
      %265 = vrot.lane.b32.xlu0 %v247, 127
      %v266 = vpop.permute.xlu0 %265
      %267 = vrot.lane.b32.xlu0 %v244, 127
      %v268 = vpop.permute.xlu0 %267
      %vm269 = vcmask 1039360
      %v270 = vsel %vm269, %v264, %v266
      %v271 = vsel %vm269, %v266, %v268
      %275 = vst [vmem:[#allocation2 + $0x18] sm:$0xf] %v270
      %276 = vst [vmem:[#allocation2 + $0x20] sm:$0xf] %v271
      %277 = vst.msk [vmem:[#allocation2 + $0x28] sm:$0xf] %vm251, %v268
      %278 = vrot.lane.b32.xlu0 %v255, 127
      %v279 = vpop.permute.xlu0 %278
      %280 = vrot.lane.b32.xlu0 %v241, 127
      %v281 = vpop.permute.xlu0 %280
      %282 = vrot.lane.b32.xlu0 %v256, 127
      %v283 = vpop.permute.xlu0 %282
      %v284 = vsel %vm269, %v279, %v281
      %v285 = vsel %vm269, %v281, %v283
      %289 = vst [vmem:[#allocation2 + $0x18] sm:$0xf0] %v284
      %290 = vst [vmem:[#allocation2 + $0x20] sm:$0xf0] %v285
      %291 = vst.msk [vmem:[#allocation2 + $0x28] sm:$0xf0] %vm261, %v283
      %292 = vrot.lane.b32.xlu0 %v243, 126
      %v293 = vpop.permute.xlu0 %292
      %294 = vrot.lane.b32.xlu0 %v247, 126
      %v295 = vpop.permute.xlu0 %294
      %296 = vrot.lane.b32.xlu0 %v244, 126
      %v297 = vpop.permute.xlu0 %296
      %vm298 = vcmask 1031168
      %v299 = vsel %vm298, %v293, %v295
      %v300 = vsel %vm298, %v295, %v297
      %304 = vst [vmem:[#allocation2 + $0x30] sm:$0xf] %v299
      %305 = vst [vmem:[#allocation2 + $0x38] sm:$0xf] %v300
      %306 = vst.msk [vmem:[#allocation2 + $0x40] sm:$0xf] %vm251, %v297
      %307 = vrot.lane.b32.xlu0 %v255, 126
      %v308 = vpop.permute.xlu0 %307
      %309 = vrot.lane.b32.xlu0 %v241, 126
      %v310 = vpop.permute.xlu0 %309
      %311 = vrot.lane.b32.xlu0 %v256, 126
      %v312 = vpop.permute.xlu0 %311
      %v313 = vsel %vm298, %v308, %v310
      %v314 = vsel %vm298, %v310, %v312
      %318 = vst [vmem:[#allocation2 + $0x30] sm:$0xf0] %v313
      %319 = vst [vmem:[#allocation2 + $0x38] sm:$0xf0] %v314
      %320 = vst.msk [vmem:[#allocation2 + $0x40] sm:$0xf0] %vm261, %v312
      %321 = vrot.lane.b32.xlu0 %v243, 110
      %v322 = vpop.permute.xlu0 %321
      %323 = vrot.lane.b32.xlu0 %v247, 110
      %v324 = vpop.permute.xlu0 %323
      %325 = vrot.lane.b32.xlu0 %v244, 110
      %v326 = vpop.permute.xlu0 %325
      %vm327 = vcmask 900096
      %v328 = vsel %vm327, %v322, %v324
      %v329 = vsel %vm327, %v324, %v326
      %333 = vst [vmem:[#allocation2 + $0x48] sm:$0xf] %v328
      %334 = vst [vmem:[#allocation2 + $0x50] sm:$0xf] %v329
      %335 = vst.msk [vmem:[#allocation2 + $0x58] sm:$0xf] %vm251, %v326
      %336 = vrot.lane.b32.xlu0 %v255, 110
      %v337 = vpop.permute.xlu0 %336
      %338 = vrot.lane.b32.xlu0 %v241, 110
      %v339 = vpop.permute.xlu0 %338
      %340 = vrot.lane.b32.xlu0 %v256, 110
      %v341 = vpop.permute.xlu0 %340
      %v342 = vsel %vm327, %v337, %v339
      %v343 = vsel %vm327, %v339, %v341
      %347 = vst [vmem:[#allocation2 + $0x48] sm:$0xf0] %v342
      %348 = vst [vmem:[#allocation2 + $0x50] sm:$0xf0] %v343
      %349 = vst.msk [vmem:[#allocation2 + $0x58] sm:$0xf0] %vm261, %v341
      %350 = vrot.lane.b32.xlu0 %v243, 109
      %v351 = vpop.permute.xlu0 %350
      %352 = vrot.lane.b32.xlu0 %v247, 109
      %v353 = vpop.permute.xlu0 %352
      %354 = vrot.lane.b32.xlu0 %v244, 109
      %v355 = vpop.permute.xlu0 %354
      %vm356 = vcmask 891904
      %v357 = vsel %vm356, %v351, %v353
      %v358 = vsel %vm356, %v353, %v355
      %362 = vst [vmem:[#allocation2 + $0x60] sm:$0xf] %v357
      %363 = vst [vmem:[#allocation2 + $0x68] sm:$0xf] %v358
      %364 = vst.msk [vmem:[#allocation2 + $0x70] sm:$0xf] %vm251, %v355
      %365 = vrot.lane.b32.xlu0 %v255, 109
      %v366 = vpop.permute.xlu0 %365
      %367 = vrot.lane.b32.xlu0 %v241, 109
      %v368 = vpop.permute.xlu0 %367
      %369 = vrot.lane.b32.xlu0 %v256, 109
      %v370 = vpop.permute.xlu0 %369
      %v371 = vsel %vm356, %v366, %v368
      %v372 = vsel %vm356, %v368, %v370
      %376 = vst [vmem:[#allocation2 + $0x60] sm:$0xf0] %v371
      %377 = vst [vmem:[#allocation2 + $0x68] sm:$0xf0] %v372
      %378 = vst.msk [vmem:[#allocation2 + $0x70] sm:$0xf0] %vm261, %v370
      %379 = vrot.lane.b32.xlu0 %v243, 108
      %v380 = vpop.permute.xlu0 %379
      %381 = vrot.lane.b32.xlu0 %v247, 108
      %v382 = vpop.permute.xlu0 %381
      %383 = vrot.lane.b32.xlu0 %v244, 108
      %v384 = vpop.permute.xlu0 %383
      %vm385 = vcmask 883712
      %v386 = vsel %vm385, %v380, %v382
      %v387 = vsel %vm385, %v382, %v384
      %391 = vst [vmem:[#allocation2 + $0x78] sm:$0xf] %v386
      %392 = vst [vmem:[#allocation2 + $0x80] sm:$0xf] %v387
      %393 = vst.msk [vmem:[#allocation2 + $0x88] sm:$0xf] %vm251, %v384
      %394 = vrot.lane.b32.xlu0 %v255, 108
      %v395 = vpop.permute.xlu0 %394
      %396 = vrot.lane.b32.xlu0 %v241, 108
      %v397 = vpop.permute.xlu0 %396
      %398 = vrot.lane.b32.xlu0 %v256, 108
      %v399 = vpop.permute.xlu0 %398
      %v400 = vsel %vm385, %v395, %v397
      %v401 = vsel %vm385, %v397, %v399
      %405 = vst [vmem:[#allocation2 + $0x78] sm:$0xf0] %v400
      %406 = vst [vmem:[#allocation2 + $0x80] sm:$0xf0] %v401
      %407 = vst.msk [vmem:[#allocation2 + $0x88] sm:$0xf0] %vm261, %v399
      %408 = vrot.lane.b32.xlu0 %v243, 92
      %v409 = vpop.permute.xlu0 %408
      %410 = vrot.lane.b32.xlu0 %v247, 92
      %v411 = vpop.permute.xlu0 %410
      %412 = vrot.lane.b32.xlu0 %v244, 92
      %v413 = vpop.permute.xlu0 %412
      %vm414 = vcmask 752640
      %v415 = vsel %vm414, %v409, %v411
      %v416 = vsel %vm414, %v411, %v413
      %420 = vst [vmem:[#allocation2 + $0x90] sm:$0xf] %v415
      %421 = vst [vmem:[#allocation2 + $0x98] sm:$0xf] %v416
      %422 = vst.msk [vmem:[#allocation2 + $0xa0] sm:$0xf] %vm251, %v413
      %423 = vrot.lane.b32.xlu0 %v255, 92
      %v424 = vpop.permute.xlu0 %423
      %425 = vrot.lane.b32.xlu0 %v241, 92
      %v426 = vpop.permute.xlu0 %425
      %427 = vrot.lane.b32.xlu0 %v256, 92
      %v428 = vpop.permute.xlu0 %427
      %v429 = vsel %vm414, %v424, %v426
      %v430 = vsel %vm414, %v426, %v428
      %434 = vst [vmem:[#allocation2 + $0x90] sm:$0xf0] %v429
      %435 = vst [vmem:[#allocation2 + $0x98] sm:$0xf0] %v430
      %436 = vst.msk [vmem:[#allocation2 + $0xa0] sm:$0xf0] %vm261, %v428
      %437 = vrot.lane.b32.xlu0 %v243, 91
      %v438 = vpop.permute.xlu0 %437
      %439 = vrot.lane.b32.xlu0 %v247, 91
      %v440 = vpop.permute.xlu0 %439
      %441 = vrot.lane.b32.xlu0 %v244, 91
      %v442 = vpop.permute.xlu0 %441
      %vm443 = vcmask 744448
      %v444 = vsel %vm443, %v438, %v440
      %v445 = vsel %vm443, %v440, %v442
      %449 = vst [vmem:[#allocation2 + $0xa8] sm:$0xf] %v444
      %450 = vst [vmem:[#allocation2 + $0xb0] sm:$0xf] %v445
      %451 = vst.msk [vmem:[#allocation2 + $0xb8] sm:$0xf] %vm251, %v442
      %452 = vrot.lane.b32.xlu0 %v255, 91
      %v453 = vpop.permute.xlu0 %452
      %454 = vrot.lane.b32.xlu0 %v241, 91
      %v455 = vpop.permute.xlu0 %454
      %456 = vrot.lane.b32.xlu0 %v256, 91
      %v457 = vpop.permute.xlu0 %456
      %v458 = vsel %vm443, %v453, %v455
      %v459 = vsel %vm443, %v455, %v457
      %463 = vst [vmem:[#allocation2 + $0xa8] sm:$0xf0] %v458
      %464 = vst [vmem:[#allocation2 + $0xb0] sm:$0xf0] %v459
      %465 = vst.msk [vmem:[#allocation2 + $0xb8] sm:$0xf0] %vm261, %v457
      %466 = vrot.lane.b32.xlu0 %v243, 90
      %v467 = vpop.permute.xlu0 %466
      %468 = vrot.lane.b32.xlu0 %v247, 90
      %v469 = vpop.permute.xlu0 %468
      %470 = vrot.lane.b32.xlu0 %v244, 90
      %v471 = vpop.permute.xlu0 %470
      %vm472 = vcmask 736256
      %v473 = vsel %vm472, %v467, %v469
      %v474 = vsel %vm472, %v469, %v471
      %478 = vst [vmem:[#allocation2 + $0xc0] sm:$0xf] %v473
      %479 = vst [vmem:[#allocation2 + $0xc8] sm:$0xf] %v474
      %480 = vst.msk [vmem:[#allocation2 + $0xd0] sm:$0xf] %vm251, %v471
      %481 = vrot.lane.b32.xlu0 %v255, 90
      %v482 = vpop.permute.xlu0 %481
      %483 = vrot.lane.b32.xlu0 %v241, 90
      %v484 = vpop.permute.xlu0 %483
      %485 = vrot.lane.b32.xlu0 %v256, 90
      %v486 = vpop.permute.xlu0 %485
      %v487 = vsel %vm472, %v482, %v484
      %v488 = vsel %vm472, %v484, %v486
      %492 = vst [vmem:[#allocation2 + $0xc0] sm:$0xf0] %v487
      %493 = vst [vmem:[#allocation2 + $0xc8] sm:$0xf0] %v488
      %494 = vst.msk [vmem:[#allocation2 + $0xd0] sm:$0xf0] %vm261, %v486
      %v495 = vld [vmem:[%s1] sm:$0xff]
      %v496 = vld [vmem:[%s1 + $0x8] sm:$0xff]
      %v497 = vld [vmem:[#allocation2] sm:$0xff]
      %v498 = vld [vmem:[#allocation2 + $0x8] sm:$0xff]
      %v499 = vld [vmem:[#allocation2 + $0x10] sm:$0xff]
      %v500 = vld [vmem:[#allocation2 + $0x18] sm:$0xff]
      %v501 = vld [vmem:[#allocation2 + $0x20] sm:$0xff]
      %v502 = vld [vmem:[#allocation2 + $0x28] sm:$0xff]
      %v503 = vld [vmem:[#allocation2 + $0x30] sm:$0xff]
      %v504 = vld [vmem:[#allocation2 + $0x38] sm:$0xff]
      %v505 = vld [vmem:[#allocation2 + $0x40] sm:$0xff]
      %v506 = vld [vmem:[#allocation2 + $0x48] sm:$0xff]
      %v507 = vld [vmem:[#allocation2 + $0x50] sm:$0xff]
      %v508 = vld [vmem:[#allocation2 + $0x58] sm:$0xff]
      %v509 = vld [vmem:[#allocation2 + $0x60] sm:$0xff]
      %v510 = vld [vmem:[#allocation2 + $0x68] sm:$0xff]
      %v511 = vld [vmem:[#allocation2 + $0x70] sm:$0xff]
      %v512 = vld [vmem:[#allocation2 + $0x78] sm:$0xff]
      %v513 = vld [vmem:[#allocation2 + $0x80] sm:$0xff]
      %v514 = vld [vmem:[#allocation2 + $0x88] sm:$0xff]
      %v515 = vld [vmem:[#allocation2 + $0x90] sm:$0xff]
      %v516 = vld [vmem:[#allocation2 + $0x98] sm:$0xff]
      %v517 = vld [vmem:[#allocation2 + $0xa0] sm:$0xff]
      %v518 = vld [vmem:[#allocation2 + $0xa8] sm:$0xff]
      %v519 = vld [vmem:[#allocation2 + $0xb0] sm:$0xff]
      %v520 = vld [vmem:[#allocation2 + $0xb8] sm:$0xff]
      %v521 = vld [vmem:[#allocation2 + $0xc0] sm:$0xff]
      %v522 = vld [vmem:[#allocation2 + $0xc8] sm:$0xff]
      %v523 = vld [vmem:[#allocation2 + $0xd0] sm:$0xff]
      %vm524 = vcmask 588800
      %v526 = vsel %vm524, %v495, 0
      %v529 = vsel %vm524, %v496, 0
      %531 = vmatprep.subr.mxu0 %v498
      %532 = vmatpush1.msra.mxu0 %v497
      %533 = vmatprep.subr.mxu0 %v501
      %534 = vmatpush1.msra.mxu0 %v500
      %535 = vmatprep.subr.mxu0 %v504
      %536 = vmatpush1.msra.mxu0 %v503
      %537 = vmatprep.subr.mxu0 %v507
      %538 = vmatpush1.msra.mxu0 %v506
      %539 = vmatprep.subr.mxu0 %v510
      %540 = vmatpush1.msra.mxu0 %v509
      %541 = vmatprep.subr.mxu0 %v513
      %542 = vmatpush1.msra.mxu0 %v512
      %543 = vmatprep.subr.mxu0 %v516
      %544 = vmatpush1.msra.mxu0 %v515
      %545 = vmatprep.subr.mxu0 %v519
      %546 = vmatpush1.msra.mxu0 %v518
      %547 = vmatprep.subr.mxu0 %v522
      %548 = vmatpush1.msra.mxu0 %v521
      %549 = vmatprep.subr.mxu0 0.0
      %550 = vmatpush1.msra.mxu0 0.0
      %551 = vmatprep.subr.mxu0 0.0
      %552 = vmatpush1.msra.mxu0 0.0
      %553 = vmatprep.subr.mxu0 0.0
      %554 = vmatpush1.msra.mxu0 0.0
      %555 = vmatprep.subr.mxu0 0.0
      %556 = vmatpush1.msra.mxu0 0.0
      %557 = vmatprep.subr.mxu0 0.0
      %558 = vmatpush1.msra.mxu0 0.0
      %559 = vmatprep.subr.mxu0 0.0
      %560 = vmatpush1.msra.mxu0 0.0
      %561 = vmatprep.subr.mxu0 0.0
      %562 = vmatpush1.msra.mxu0 0.0
      %563 = vmatprep.subr.mxu0 0.0
      %564 = vmatpush1.msra.mxu0 0.0
      %565 = vmatprep.subr.mxu0 0.0
      %566 = vmatpush1.msra.mxu0 0.0
      %567 = vmatprep.subr.mxu0 0.0
      %568 = vmatpush1.msra.mxu0 0.0
      %569 = vmatprep.subr.mxu0 0.0
      %570 = vmatpush1.msra.mxu0 0.0
      %571 = vmatprep.subr.mxu0 0.0
      %572 = vmatpush1.msra.mxu0 0.0
      %573 = vmatprep.subr.mxu0 0.0
      %574 = vmatpush1.msra.mxu0 0.0
      %575 = vmatprep.subr.mxu0 0.0
      %576 = vmatpush1.msra.mxu0 0.0
      %577 = vmatprep.subr.mxu0 0.0
      %578 = vmatpush1.msra.mxu0 0.0
      %579 = vmatprep.subr.mxu0 0.0
      %580 = vmatpush1.msra.mxu0 0.0
      %581 = vmatprep.subr.mxu0 0.0
      %582 = vmatpush1.msra.mxu0 0.0
      %583 = vmatprep.subr.mxu0 0.0
      %584 = vmatpush1.msra.mxu0 0.0
      %585 = vmatprep.subr.mxu0 0.0
      %586 = vmatpush1.msra.mxu0 0.0
      %587 = vmatprep.subr.mxu0 0.0
      %588 = vmatpush1.msra.mxu0 0.0
      %589 = vmatprep.subr.mxu0 0.0
      %590 = vmatpush1.msra.mxu0 0.0
      %591 = vmatprep.subr.mxu0 0.0
      %592 = vmatpush1.msra.mxu0 0.0
      %593 = vmatprep.subr.mxu0 0.0
      %594 = vmatpush1.msra.mxu0 0.0
      %595 = vmatprep.mubr.f32.mxu0 0.0
      %596 = vmatmul.mubr.f32.gmra.mrb[0].mxu0 %v526
      %v597 = vpop.f32.mrb[0].mxu0
      %v598 = vadd.f32 0.0, %v597
      %v599 = vpop.f32.mrb[0].mxu0
      %v600 = vadd.f32 0.0, %v599
      %601 = vmatprep.mubr.f32.mxu0 0.0
      %602 = vmatmul.mubr.f32.gmra.mrb[0].mxu0 %v529
      %v603 = vpop.f32.mrb[0].mxu0
      %v604 = vadd.f32 0.0, %v603
      %v605 = vpop.f32.mrb[0].mxu0
      %v606 = vadd.f32 0.0, %v605
      %607 = vdwg.mxu0
      %608 = vmatprep.subr.mxu0 0.0
      %609 = vmatpush1.msra.mxu0 %v499
      %610 = vmatprep.subr.mxu0 0.0
      %611 = vmatpush1.msra.mxu0 %v502
      %612 = vmatprep.subr.mxu0 0.0
      %613 = vmatpush1.msra.mxu0 %v505
      %614 = vmatprep.subr.mxu0 0.0
      %615 = vmatpush1.msra.mxu0 %v508
      %616 = vmatprep.subr.mxu0 0.0
      %617 = vmatpush1.msra.mxu0 %v511
      %618 = vmatprep.subr.mxu0 0.0
      %619 = vmatpush1.msra.mxu0 %v514
      %620 = vmatprep.subr.mxu0 0.0
      %621 = vmatpush1.msra.mxu0 %v517
      %622 = vmatprep.subr.mxu0 0.0
      %623 = vmatpush1.msra.mxu0 %v520
      %624 = vmatprep.subr.mxu0 0.0
      %625 = vmatpush1.msra.mxu0 %v523
      %626 = vmatprep.subr.mxu0 0.0
      %627 = vmatpush1.msra.mxu0 0.0
      %628 = vmatprep.subr.mxu0 0.0
      %629 = vmatpush1.msra.mxu0 0.0
      %630 = vmatprep.subr.mxu0 0.0
      %631 = vmatpush1.msra.mxu0 0.0
      %632 = vmatprep.subr.mxu0 0.0
      %633 = vmatpush1.msra.mxu0 0.0
      %634 = vmatprep.subr.mxu0 0.0
      %635 = vmatpush1.msra.mxu0 0.0
      %636 = vmatprep.subr.mxu0 0.0
      %637 = vmatpush1.msra.mxu0 0.0
      %638 = vmatprep.subr.mxu0 0.0
      %639 = vmatpush1.msra.mxu0 0.0
      %640 = vmatprep.subr.mxu0 0.0
      %641 = vmatpush1.msra.mxu0 0.0
      %642 = vmatprep.subr.mxu0 0.0
      %643 = vmatpush1.msra.mxu0 0.0
      %644 = vmatprep.subr.mxu0 0.0
      %645 = vmatpush1.msra.mxu0 0.0
      %646 = vmatprep.subr.mxu0 0.0
      %647 = vmatpush1.msra.mxu0 0.0
      %648 = vmatprep.subr.mxu0 0.0
      %649 = vmatpush1.msra.mxu0 0.0
      %650 = vmatprep.subr.mxu0 0.0
      %651 = vmatpush1.msra.mxu0 0.0
      %652 = vmatprep.subr.mxu0 0.0
      %653 = vmatpush1.msra.mxu0 0.0
      %654 = vmatprep.subr.mxu0 0.0
      %655 = vmatpush1.msra.mxu0 0.0
      %656 = vmatprep.subr.mxu0 0.0
      %657 = vmatpush1.msra.mxu0 0.0
      %658 = vmatprep.subr.mxu0 0.0
      %659 = vmatpush1.msra.mxu0 0.0
      %660 = vmatprep.subr.mxu0 0.0
      %661 = vmatpush1.msra.mxu0 0.0
      %662 = vmatprep.subr.mxu0 0.0
      %663 = vmatpush1.msra.mxu0 0.0
      %664 = vmatprep.subr.mxu0 0.0
      %665 = vmatpush1.msra.mxu0 0.0
      %666 = vmatprep.subr.mxu0 0.0
      %667 = vmatpush1.msra.mxu0 0.0
      %668 = vmatprep.subr.mxu0 0.0
      %669 = vmatpush1.msra.mxu0 0.0
      %670 = vmatprep.subr.mxu0 0.0
      %671 = vmatpush1.msra.mxu0 0.0
      %672 = vmatprep.mubr.f32.mxu0 0.0
      %673 = vmatmul.mubr.f32.gmra.mrb[0].mxu0 %v526
      %v674 = vpop.f32.mrb[0].mxu0
      %v675 = vadd.f32 0.0, %v674
      %v676 = vpop.f32.mrb[0].mxu0
      %677 = vmatprep.mubr.f32.mxu0 0.0
      %678 = vmatmul.mubr.f32.gmra.mrb[0].mxu0 %v529
      %v679 = vpop.f32.mrb[0].mxu0
      %v680 = vadd.f32 0.0, %v679
      %v681 = vpop.f32.mrb[0].mxu0
      %682 = vdwg.mxu0
      %v683 = vld [vmem:[%s3] sm:$0xff]
      %v684 = vld [vmem:[%s3 + $0x8] sm:$0xff]
      %v685 = vld [vmem:[%s3 + $0x10] sm:$0xff]
      %v686 = vld [vmem:[%s3 + $0x18] sm:$0xff]
      %v687 = vld [vmem:[%s3 + $0x20] sm:$0xff]
      %v688 = vld [vmem:[%s3 + $0x28] sm:$0xff]
      %v689 = vld [vmem:[%s3 + $0x30] sm:$0xff]
      %v690 = vld [vmem:[%s3 + $0x38] sm:$0xff]
      %v691 = vld [vmem:[%s3 + $0x40] sm:$0xff]
      %v692 = vld [vmem:[%s3 + $0x48] sm:$0xff]
      %v693 = vld [vmem:[%s3 + $0x50] sm:$0xff]
      %v694 = vld [vmem:[%s3 + $0x58] sm:$0xff]
      %v695 = vld [vmem:[%s3 + $0x60] sm:$0xff]
      %v696 = vld [vmem:[%s3 + $0x68] sm:$0xff]
      %v697 = vld [vmem:[%s3 + $0x70] sm:$0xff]
      %v698 = vld [vmem:[%s3 + $0x78] sm:$0xff]
      %v699 = vld [vmem:[%s3 + $0x80] sm:$0xff]
      %v700 = vld [vmem:[%s3 + $0x88] sm:$0xff]
      %v701 = vld [vmem:[%s3 + $0x90] sm:$0xff]
      %v702 = vld [vmem:[%s3 + $0x98] sm:$0xff]
      %v703 = vld [vmem:[%s3 + $0xa0] sm:$0xff]
      %v704 = vld [vmem:[%s3 + $0xa8] sm:$0xff]
      %v705 = vld [vmem:[%s3 + $0xb0] sm:$0xff]
      %v706 = vld [vmem:[%s3 + $0xb8] sm:$0xff]
      %v707 = vld [vmem:[%s3 + $0xc0] sm:$0xff]
      %v708 = vld [vmem:[%s3 + $0xc8] sm:$0xff]
      %v709 = vld [vmem:[%s3 + $0xd0] sm:$0xff]
      %v710 = vld [vmem:[%s3 + $0xd8] sm:$0xff]
      %v711 = vld [vmem:[%s3 + $0xe0] sm:$0xff]
      %v712 = vld [vmem:[%s3 + $0xe8] sm:$0xff]
      %v713 = vld [vmem:[%s3 + $0xf0] sm:$0xff]
      %v714 = vld [vmem:[%s3 + $0xf8] sm:$0xff]
      %v715 = vld [vmem:[%s3 + $0x100] sm:$0xff]
      %v716 = vld [vmem:[%s3 + $0x108] sm:$0xff]
      %v717 = vld [vmem:[%s3 + $0x110] sm:$0xff]
      %v718 = vld [vmem:[%s3 + $0x118] sm:$0xff]
      %v719 = vld [vmem:[%s3 + $0x120] sm:$0xff]
      %v720 = vld [vmem:[%s3 + $0x128] sm:$0xff]
      %v721 = vld [vmem:[%s3 + $0x130] sm:$0xff]
      %v722 = vld [vmem:[%s3 + $0x138] sm:$0xff]
      %v723 = vld [vmem:[%s3 + $0x140] sm:$0xff]
      %v724 = vld [vmem:[%s3 + $0x148] sm:$0xff]
      %v725 = vld [vmem:[%s3 + $0x150] sm:$0xff]
      %v726 = vld [vmem:[%s3 + $0x158] sm:$0xff]
      %v727 = vld [vmem:[%s3 + $0x160] sm:$0xff]
      %v728 = vld [vmem:[%s3 + $0x168] sm:$0xff]
      %v729 = vld [vmem:[%s3 + $0x170] sm:$0xff]
      %v730 = vld [vmem:[%s3 + $0x178] sm:$0xff]
      %v731 = vld [vmem:[%s3 + $0x180] sm:$0xff]
      %v732 = vld [vmem:[%s3 + $0x188] sm:$0xff]
      %v733 = vld [vmem:[%s3 + $0x190] sm:$0xff]
      %v734 = vld [vmem:[%s3 + $0x198] sm:$0xff]
      %v735 = vld [vmem:[%s3 + $0x1a0] sm:$0xff]
      %v736 = vld [vmem:[%s3 + $0x1a8] sm:$0xff]
      %v737 = vld [vmem:[%s3 + $0x1b0] sm:$0xff]
      %v738 = vld [vmem:[%s3 + $0x1b8] sm:$0xff]
      %v739 = vld [vmem:[%s3 + $0x1c0] sm:$0xff]
      %v740 = vld [vmem:[%s3 + $0x1c8] sm:$0xff]
      %v741 = vld [vmem:[%s3 + $0x1d0] sm:$0xff]
      %v742 = vld [vmem:[%s3 + $0x1d8] sm:$0xff]
      %v743 = vld [vmem:[%s3 + $0x1e0] sm:$0xff]
      %v744 = vld [vmem:[%s3 + $0x1e8] sm:$0xff]
      %v745 = vld [vmem:[%s3 + $0x1f0] sm:$0xff]
      %v746 = vld [vmem:[%s3 + $0x1f8] sm:$0xff]
      %v747 = vld [vmem:[%s3 + $0x200] sm:$0xff]
      %v748 = vld [vmem:[%s3 + $0x208] sm:$0xff]
      %v749 = vld [vmem:[%s3 + $0x210] sm:$0xff]
      %v750 = vld [vmem:[%s3 + $0x218] sm:$0xff]
      %v751 = vld [vmem:[%s3 + $0x220] sm:$0xff]
      %v752 = vld [vmem:[%s3 + $0x228] sm:$0xff]
      %v753 = vld [vmem:[%s3 + $0x230] sm:$0xff]
      %v754 = vld [vmem:[%s3 + $0x238] sm:$0xff]
      %v755 = vld [vmem:[%s2] sm:$0xff]
      %v756 = vld [vmem:[%s2 + $0x8] sm:$0xff]
      %758 = vset.pattern.permute.xlu0 0
      %759 = vperm.xlu0 %758, %v755
      %v760 = vpop.permute.xlu0 %759
      %763 = vset.pattern.permute.xlu0 0
      %764 = vperm.xlu0 %763, %v756
      %v765 = vpop.permute.xlu0 %764
      %vm767 = vcmask 261120
      %v769 = vsel %vm767, %v675, 0
      %v772 = vsel %vm767, %v680, 0
      %774 = vmatprep.subr.mxu0 %v684
      %775 = vmatpush1.msra.mxu0 %v683
      %776 = vmatprep.subr.mxu0 %v686
      %777 = vmatpush1.msra.mxu0 %v685
      %778 = vmatprep.subr.mxu0 %v688
      %779 = vmatpush1.msra.mxu0 %v687
      %780 = vmatprep.subr.mxu0 %v690
      %781 = vmatpush1.msra.mxu0 %v689
      %782 = vmatprep.subr.mxu0 %v692
      %783 = vmatpush1.msra.mxu0 %v691
      %784 = vmatprep.subr.mxu0 %v694
      %785 = vmatpush1.msra.mxu0 %v693
      %786 = vmatprep.subr.mxu0 %v696
      %787 = vmatpush1.msra.mxu0 %v695
      %788 = vmatprep.subr.mxu0 %v698
      %789 = vmatpush1.msra.mxu0 %v697
      %790 = vmatprep.subr.mxu0 %v700
      %791 = vmatpush1.msra.mxu0 %v699
      %792 = vmatprep.subr.mxu0 %v702
      %793 = vmatpush1.msra.mxu0 %v701
      %794 = vmatprep.subr.mxu0 %v704
      %795 = vmatpush1.msra.mxu0 %v703
      %796 = vmatprep.subr.mxu0 %v706
      %797 = vmatpush1.msra.mxu0 %v705
      %798 = vmatprep.subr.mxu0 %v708
      %799 = vmatpush1.msra.mxu0 %v707
      %800 = vmatprep.subr.mxu0 %v710
      %801 = vmatpush1.msra.mxu0 %v709
      %802 = vmatprep.subr.mxu0 %v712
      %803 = vmatpush1.msra.mxu0 %v711
      %804 = vmatprep.subr.mxu0 %v714
      %805 = vmatpush1.msra.mxu0 %v713
      %806 = vmatprep.subr.mxu0 %v716
      %807 = vmatpush1.msra.mxu0 %v715
      %808 = vmatprep.subr.mxu0 %v718
      %809 = vmatpush1.msra.mxu0 %v717
      %810 = vmatprep.subr.mxu0 %v720
      %811 = vmatpush1.msra.mxu0 %v719
      %812 = vmatprep.subr.mxu0 %v722
      %813 = vmatpush1.msra.mxu0 %v721
      %814 = vmatprep.subr.mxu0 %v724
      %815 = vmatpush1.msra.mxu0 %v723
      %816 = vmatprep.subr.mxu0 %v726
      %817 = vmatpush1.msra.mxu0 %v725
      %818 = vmatprep.subr.mxu0 %v728
      %819 = vmatpush1.msra.mxu0 %v727
      %820 = vmatprep.subr.mxu0 %v730
      %821 = vmatpush1.msra.mxu0 %v729
      %822 = vmatprep.subr.mxu0 %v732
      %823 = vmatpush1.msra.mxu0 %v731
      %824 = vmatprep.subr.mxu0 %v734
      %825 = vmatpush1.msra.mxu0 %v733
      %826 = vmatprep.subr.mxu0 %v736
      %827 = vmatpush1.msra.mxu0 %v735
      %828 = vmatprep.subr.mxu0 %v738
      %829 = vmatpush1.msra.mxu0 %v737
      %830 = vmatprep.subr.mxu0 %v740
      %831 = vmatpush1.msra.mxu0 %v739
      %832 = vmatprep.subr.mxu0 %v742
      %833 = vmatpush1.msra.mxu0 %v741
      %834 = vmatprep.subr.mxu0 %v744
      %835 = vmatpush1.msra.mxu0 %v743
      %836 = vmatprep.subr.mxu0 %v746
      %837 = vmatpush1.msra.mxu0 %v745
      %838 = vmatprep.mubr.f32.mxu0 %v600
      %839 = vmatmul.mubr.f32.gmra.mrb[0].mxu0 %v598
      %v840 = vpop.f32.mrb[0].mxu0
      %v841 = vadd.f32 %v760, %v840
      %v842 = vpop.f32.mrb[0].mxu0
      %v843 = vadd.f32 %v760, %v842
      %844 = vmatprep.mubr.f32.mxu0 %v606
      %845 = vmatmul.mubr.f32.gmra.mrb[0].mxu0 %v604
      %v846 = vpop.f32.mrb[0].mxu0
      %v847 = vadd.f32 %v765, %v846
      %v848 = vpop.f32.mrb[0].mxu0
      %v849 = vadd.f32 %v765, %v848
      %850 = vdwg.mxu0
      %851 = vmatprep.subr.mxu0 %v748
      %852 = vmatpush1.msra.mxu0 %v747
      %853 = vmatprep.subr.mxu0 %v750
      %854 = vmatpush1.msra.mxu0 %v749
      %855 = vmatprep.subr.mxu0 %v752
      %856 = vmatpush1.msra.mxu0 %v751
      %857 = vmatprep.subr.mxu0 %v754
      %858 = vmatpush1.msra.mxu0 %v753
      %859 = vmatprep.subr.mxu0 0.0
      %860 = vmatpush1.msra.mxu0 0.0
      %861 = vmatprep.subr.mxu0 0.0
      %862 = vmatpush1.msra.mxu0 0.0
      %863 = vmatprep.subr.mxu0 0.0
      %864 = vmatpush1.msra.mxu0 0.0
      %865 = vmatprep.subr.mxu0 0.0
      %866 = vmatpush1.msra.mxu0 0.0
      %867 = vmatprep.subr.mxu0 0.0
      %868 = vmatpush1.msra.mxu0 0.0
      %869 = vmatprep.subr.mxu0 0.0
      %870 = vmatpush1.msra.mxu0 0.0
      %871 = vmatprep.subr.mxu0 0.0
      %872 = vmatpush1.msra.mxu0 0.0
      %873 = vmatprep.subr.mxu0 0.0
      %874 = vmatpush1.msra.mxu0 0.0
      %875 = vmatprep.subr.mxu0 0.0
      %876 = vmatpush1.msra.mxu0 0.0
      %877 = vmatprep.subr.mxu0 0.0
      %878 = vmatpush1.msra.mxu0 0.0
      %879 = vmatprep.subr.mxu0 0.0
      %880 = vmatpush1.msra.mxu0 0.0
      %881 = vmatprep.subr.mxu0 0.0
      %882 = vmatpush1.msra.mxu0 0.0
      %883 = vmatprep.subr.mxu0 0.0
      %884 = vmatpush1.msra.mxu0 0.0
      %885 = vmatprep.subr.mxu0 0.0
      %886 = vmatpush1.msra.mxu0 0.0
      %887 = vmatprep.subr.mxu0 0.0
      %888 = vmatpush1.msra.mxu0 0.0
      %889 = vmatprep.subr.mxu0 0.0
      %890 = vmatpush1.msra.mxu0 0.0
      %891 = vmatprep.subr.mxu0 0.0
      %892 = vmatpush1.msra.mxu0 0.0
      %893 = vmatprep.subr.mxu0 0.0
      %894 = vmatpush1.msra.mxu0 0.0
      %895 = vmatprep.subr.mxu0 0.0
      %896 = vmatpush1.msra.mxu0 0.0
      %897 = vmatprep.subr.mxu0 0.0
      %898 = vmatpush1.msra.mxu0 0.0
      %899 = vmatprep.subr.mxu0 0.0
      %900 = vmatpush1.msra.mxu0 0.0
      %901 = vmatprep.subr.mxu0 0.0
      %902 = vmatpush1.msra.mxu0 0.0
      %903 = vmatprep.subr.mxu0 0.0
      %904 = vmatpush1.msra.mxu0 0.0
      %905 = vmatprep.subr.mxu0 0.0
      %906 = vmatpush1.msra.mxu0 0.0
      %907 = vmatprep.subr.mxu0 0.0
      %908 = vmatpush1.msra.mxu0 0.0
      %909 = vmatprep.subr.mxu0 0.0
      %910 = vmatpush1.msra.mxu0 0.0
      %911 = vmatprep.subr.mxu0 0.0
      %912 = vmatpush1.msra.mxu0 0.0
      %913 = vmatprep.subr.mxu0 0.0
      %914 = vmatpush1.msra.mxu0 0.0
      %915 = vmatprep.mubr.f32.mxu0 0.0
      %916 = vmatmul.mubr.f32.gmra.mrb[0].mxu0 %v769
      %v917 = vpop.f32.mrb[0].mxu0
      %v918 = vadd.f32 %v841, %v917
      %v919 = vpop.f32.mrb[0].mxu0
      %v920 = vadd.f32 %v843, %v919
      %921 = vmatprep.mubr.f32.mxu0 0.0
      %922 = vmatmul.mubr.f32.gmra.mrb[0].mxu0 %v772
      %v923 = vpop.f32.mrb[0].mxu0
      %v924 = vadd.f32 %v847, %v923
      %v925 = vpop.f32.mrb[0].mxu0
      %v926 = vadd.f32 %v849, %v925
      %927 = vdwg.mxu0
      %928 = vst [vmem:[%s232] sm:$0xff] %v918
      %929 = vst [vmem:[%s232 + $0x8] sm:$0xff] %v920
      %v930 = vmax.f32 %v924, 0.0
      %v931 = vmax.f32 %v926, 0.0
      %v932 = vmin.f32 %v930, 1.0
      %v933 = vmin.f32 %v931, 1.0
      %934 = vst [vmem:[%s237] sm:$0xff] %v932
      %935 = vst [vmem:[%s237 + $0x8] sm:$0xff] %v933
      %p936 = scmp.lt.s32.totalorder %s17, 1
      %s937 = scalar_select %p936, %s17, 1
      %s938 = smul.addr %s937, 2
      %s939 = smul.addr %s938, 8
      %s940 = scalar_lea.vmem %s4, %s939
      %p941 = scmp.lt.s32.totalorder %s17, 1
      %s942 = scalar_select %p941, %s17, 1
      %s943 = smul.addr %s942, 2
      %s944 = smul.addr %s943, 8
      %s945 = scalar_lea.vmem %s5, %s944
      // Predicated region
      $region37: #{partial_conv.1} parent=35 // pred_check
        %p946 = pneg %p124
      $region38: #{partial_conv.1} parent=35 // pred_check_branch
        %948 = sbr.rel (%p946) target = $region40
      $region39: #{partial_conv.1} parent=35 // pred_region
        _
      $region40: #{partial_conv.1} parent=35 // pred_fallthru
        _
      // Predicated region
      $region41: #{partial_conv.1} parent=35 // pred_check
        %p949 = pneg %p150
      $region42: #{partial_conv.1} parent=35 // pred_check_branch
        %951 = sbr.rel (%p949) target = $region44
      $region43: #{partial_conv.1} parent=35 // pred_region
        _
      $region44: #{partial_conv.1} parent=35 // pred_fallthru
        _
    $region36: #{partial_conv.1} parent=5 // pred_fallthru
      _
    %p952 = scmp.le.s32.totalorder 2, %s12
    // Predicated region
    $region45: #{partial_conv.1} parent=5 // pred_check
      %p953 = pneg %p952
    $region46: #{partial_conv.1} parent=5 // pred_check_branch
      %955 = sbr.rel (%p953) target = $region48
    $region47: #{partial_conv.1} parent=5 // pred_region
      %s956 = ssub.s32 %s12, 2
      // Predicated region
      $region49: #{partial_conv.1} parent=47 // pred_check
        %p957 = pneg %p130
      $region50: #{partial_conv.1} parent=47 // pred_check_branch
        %959 = sbr.rel (%p957) target = $region52
      $region51: #{partial_conv.1} parent=47 // pred_region
        %p960 = scmp.lt.s32.totalorder %s18, 1
        %s961 = scalar_select %p960, %s18, 1
        %s962 = smul.addr %s961, 2
        %s963 = smul.addr %s962, 8
        %s964 = scalar_lea.vmem %s4, %s963
      $region52: #{partial_conv.1} parent=47 // pred_fallthru
        _
      // Predicated region
      $region53: #{partial_conv.1} parent=47 // pred_check
        %p965 = pneg %p156
      $region54: #{partial_conv.1} parent=47 // pred_check_branch
        %967 = sbr.rel (%p965) target = $region56
      $region55: #{partial_conv.1} parent=47 // pred_region
        %p968 = scmp.lt.s32.totalorder %s18, 1
        %s969 = scalar_select %p968, %s18, 1
        %s970 = smul.addr %s969, 2
        %s971 = smul.addr %s970, 8
        %s972 = scalar_lea.vmem %s5, %s971
      $region56: #{partial_conv.1} parent=47 // pred_fallthru
        _
    $region48: #{partial_conv.1} parent=5 // pred_fallthru
      _
  $region6: #{partial_conv.1} parent=0 // loop_footer
    %s16 = sadd.s32 1, %s12
  $region7: #{partial_conv.1} parent=0 // loop_footer_branch
    %11 = sbr.rel target = $region3
  $region8: #{partial_conv.1} parent=0 // loop_exit
    _

</llo_original>
